<compile_context>
chip_gen: v5e
topology: v5e:2x2
jax: 0.10.0
libtpu: 0.0.40
codegen_flags: <defaults>
</compile_context>

<pallas_src>
import functools

import jax
import jax.numpy as jnp
from jax.experimental import pallas as pl
from jax.experimental.pallas import tpu as pltpu


def _round_up(x, m):
    return ((x + m - 1) // m) * m


def _fused_conv_relu_kernel(x_ref, halo_ref, w_ref, b_ref, o_ref, *, k_max, tile_rows):
    """Fused multi-branch conv + bias + ReLU for one sequence tile.

    x_ref:    (tile_rows, emb)          f32  rows [i*T, (i+1)*T) of the padded input
    halo_ref: (halo_rows, emb)          f32  rows [(i+1)*T, (i+1)*T + halo) (zero-padded)
    w_ref:    (k_max, emb, nf_pad)      bf16 fused, k-aligned, lane-padded weights
    b_ref:    (1, nf_pad)               f32  fused, lane-padded bias
    o_ref:    (tile_rows, nf_pad)       f32  output tile (lane dense)
    """
    # Assemble the halo'd tile once; all shifts below are rolls of this value.
    xt = jnp.concatenate([x_ref[...], halo_ref[...]], axis=0)      # (T + halo, emb)
    rows = xt.shape[0]
    nf_pad = o_ref.shape[-1]

    # Bias-initialised accumulator (hoisted broadcast, done once per tile).
    acc = jnp.broadcast_to(b_ref[...], (rows, nf_pad))

    # k_max is a small static kernel extent -> unrolled loop of MXU matmuls.
    # Output row t needs xt[t + dk]; jnp.roll semantics => shift = -dk (mod rows).
    for dk in range(k_max):
        shift = (rows - dk) % rows
        xs = xt if shift == 0 else pltpu.roll(xt, shift=shift, axis=0)
        acc = acc + jnp.dot(
            xs.astype(jnp.bfloat16),            # bf16 MXU inputs,
            w_ref[dk],                          # bf16 weights,
            preferred_element_type=jnp.float32, # f32 accumulation.
        )

    # Rows >= tile_rows only exist to keep the roll wrap-around harmless; drop them.
    o_ref[...] = jnp.maximum(acc[:tile_rows, :], 0.0)


def multi_conv_forward(sentence, weights, biases):
    """Mirrors MultiConvModule.forward (pooling=False, dropout = identity).

    sentence: (seq_len, 1, emb_dim) float32
    weights:  list of (k_i, emb_dim, nf_i) float32   (torch weight[f,0,dk,e] -> [dk,e,f])
    biases:   list of (1, nf_i) float32
    returns:  (seq_len, 1, sum(n_filters)) float32
    """
    seq_len, _, emb_dim = sentence.shape
    x2d = sentence.reshape(seq_len, emb_dim)

    kernel_sizes = [int(w.shape[0]) for w in weights]
    n_filters = [int(w.shape[2]) for w in weights]
    for k in kernel_sizes:
        if k % 2 == 0:
            # Even kernels with padding=(k-1)//2 change the output length in the
            # original module (and would read OOB here); only odd sizes are valid.
            raise ValueError("MultiConvModule requires odd kernel sizes, got %d" % k)

    k_max = max(kernel_sizes)
    pad_max = (k_max - 1) // 2
    halo = _round_up(max(k_max - 1, 1), 8)           # sublane-aligned halo rows
    sum_nf = sum(n_filters)
    nf_pad = _round_up(sum_nf, 128)                  # lane-dense fused filter dim

    tile = max(halo, _round_up(min(seq_len, 512), halo))   # seq tile (multiple of halo)
    grid = pl.cdiv(seq_len, tile)
    total_rows = grid * tile + halo                  # padded input rows

    # --- Fuse weights: zero-pad along k (centred) and stack along filters. ---
    w_full = jnp.zeros((k_max, emb_dim, nf_pad), jnp.float32)
    b_full = jnp.zeros((1, nf_pad), jnp.float32)
    col = 0
    for w, b, k, nf in zip(weights, biases, kernel_sizes, n_filters):
        off = pad_max - (k - 1) // 2                 # centre shorter kernels inside k_max
        w_full = w_full.at[off:off + k, :, col:col + nf].set(w.astype(jnp.float32))
        b_full = b_full.at[:, col:col + nf].set(b.reshape(1, nf).astype(jnp.float32))
        col += nf
    w_full = w_full.astype(jnp.bfloat16)             # bf16 weights for the MXU

    # Single zero-pad of the input (replaces one jnp.pad per branch): x sits at row
    # offset pad_max, trailing rows are zero so tile-boundary / last-tile halo rows
    # and roll wrap-around never contribute to valid output rows.
    xpad = jnp.pad(x2d, ((pad_max, total_rows - seq_len - pad_max), (0, 0)))

    # VMEM budget (double-buffered blocks + resident weights), capped for v7x (64 MiB).
    vmem_bytes = (2 * (tile + halo) * emb_dim * 4
                  + 2 * tile * nf_pad * 4
                  + k_max * emb_dim * nf_pad * 2
                  + nf_pad * 4)
    vmem_bytes = max(4 << 20, min(3 * vmem_bytes + (2 << 20), 48 << 20))

    kernel = functools.partial(_fused_conv_relu_kernel, k_max=k_max, tile_rows=tile)
    out_pad = pl.pallas_call(
        kernel,
        out_shape=jax.ShapeDtypeStruct((grid * tile, nf_pad), jnp.float32),
        grid=(grid,),
        in_specs=[
            # main sequence tile: rows [i*T, (i+1)*T)
            pl.BlockSpec((tile, emb_dim), lambda i: (i, 0)),
            # halo rows just past the tile: rows [(i+1)*T, (i+1)*T + halo)
            pl.BlockSpec((halo, emb_dim), lambda i: ((i + 1) * (tile // halo), 0)),
            # fused weights / bias: resident across the grid
            pl.BlockSpec((k_max, emb_dim, nf_pad), lambda i: (0, 0, 0)),
            pl.BlockSpec((1, nf_pad), lambda i: (0, 0)),
        ],
        out_specs=pl.BlockSpec((tile, nf_pad), lambda i: (i, 0)),
        compiler_params=pltpu.CompilerParams(
            dimension_semantics=("parallel",),       # both TCs on v7x
            vmem_limit_bytes=vmem_bytes,
        ),
    )(xpad, xpad, w_full, b_full)

    out = out_pad[:seq_len, :sum_nf]                 # drop row / lane padding
    return out.reshape(seq_len, 1, sum_nf)           # == torch cat + squeeze + transposes


def reference_forward(sentence, weights, biases):
    """Pure-JAX f32 reference (mirrors the per-branch PyTorch math)."""
    seq_len, _, emb_dim = sentence.shape
    x2d = sentence.reshape(seq_len, emb_dim)
    outs = []
    for w, b in zip(weights, biases):
        k = w.shape[0]
        pad = (k - 1) // 2
        xp = jnp.pad(x2d, ((pad, pad), (0, 0)))
        windows = jnp.stack([xp[d:d + seq_len] for d in range(k)], axis=0)  # (k, seq, emb)
        o = jnp.einsum("kse,kef->sf", windows, w) + b.reshape(1, -1)
        outs.append(jnp.maximum(o, 0.0))
    out = jnp.concatenate(outs, axis=-1)
    return out.reshape(seq_len, 1, -1)


def init_params(key, emb_dim, n_filters, kernel_sizes):
    """Deterministic parameter init. Weight layout: (k, emb_dim, n_filter)."""
    weights, biases = [], []
    for i, (k, nf) in enumerate(zip(kernel_sizes, n_filters)):
        kw, kb = jax.random.split(jax.random.fold_in(key, i))
        fan_in = k * emb_dim
        bound = 1.0 / (fan_in ** 0.5)
        weights.append(jax.random.uniform(kw, (k, emb_dim, nf), jnp.float32,
                                          minval=-bound, maxval=bound))
        biases.append(jax.random.uniform(kb, (1, nf), jnp.float32,
                                         minval=-bound, maxval=bound))
    return weights, biases


if __name__ == "__main__":
    # Small shapes consistent with the module's forward contract.
    seq_len = 8
    emb_dim = 32
    n_filters = [4, 4]
    kernel_sizes = [3, 5]

    key = jax.random.PRNGKey(0)
    k_x, k_p = jax.random.split(key)
    sentence = jax.random.normal(k_x, (seq_len, 1, emb_dim), jnp.float32)
    weights, biases = init_params(k_p, emb_dim, n_filters, kernel_sizes)

    out = multi_conv_forward(sentence, weights, biases)
    out = jax.block_until_ready(out)
    assert out.shape == (seq_len, 1, sum(n_filters)), out.shape

    ref = reference_forward(sentence, weights, biases)
    # bf16 MXU inputs with f32 accumulation -> loose tolerance vs f32 reference.
    max_err = float(jnp.max(jnp.abs(out - ref)))
    assert jnp.allclose(out, ref, atol=5e-2, rtol=5e-2), max_err

    print("KERNEL_OK")
</pallas_src>

<mosaic_0001>
module attributes {stable_mosaic.version = 11 : i64} {
  func.func @_fused_conv_relu_kernel(%arg0: i32, %arg1: memref<8x32xf32, #tpu.memory_space<vmem>>, %arg2: memref<8x32xf32, #tpu.memory_space<vmem>>, %arg3: memref<5x32x128xbf16, #tpu.memory_space<vmem>>, %arg4: memref<1x128xf32, #tpu.memory_space<vmem>>, %arg5: memref<8x128xf32, #tpu.memory_space<vmem>>) attributes {dimension_semantics = [#tpu.dimension_semantics<parallel>], iteration_bounds = array<i64: 1>, scalar_prefetch = 0 : i64, scratch_operands = 0 : i64, tpu.core_type = #tpu.core_type<tc>, window_params = [{transform_indices = @transform_0, window_bounds = array<i64: 8, 32>}, {transform_indices = @transform_1, window_bounds = array<i64: 8, 32>}, {pipeline_mode = #tpu.pipeline_mode<synchronous>, transform_indices = @transform_2, window_bounds = array<i64: 5, 32, 128>}, {pipeline_mode = #tpu.pipeline_mode<synchronous>, transform_indices = @transform_3, window_bounds = array<i64: 1, 128>}, {transform_indices = @transform_4, window_bounds = array<i64: 8, 128>}]} {
    %c0 = arith.constant 0 : index
    %c0_0 = arith.constant 0 : index
    %0 = vector.load %arg1[%c0, %c0_0] : memref<8x32xf32, #tpu.memory_space<vmem>>, vector<8x32xf32>
    %c0_1 = arith.constant 0 : index
    %c0_2 = arith.constant 0 : index
    %1 = vector.load %arg2[%c0_1, %c0_2] : memref<8x32xf32, #tpu.memory_space<vmem>>, vector<8x32xf32>
    %2 = tpu.concatenate %0, %1 in 0 : vector<8x32xf32>, vector<8x32xf32> -> vector<16x32xf32>
    %c0_3 = arith.constant 0 : index
    %c0_4 = arith.constant 0 : index
    %3 = vector.load %arg4[%c0_3, %c0_4] : memref<1x128xf32, #tpu.memory_space<vmem>>, vector<1x128xf32>
    %4 = vector.shape_cast %3 : vector<1x128xf32> to vector<1x128xf32>
    %5 = vector.broadcast %4 : vector<1x128xf32> to vector<16x128xf32>
    %6 = arith.truncf %2 : vector<16x32xf32> to vector<16x32xbf16>
    %c0_5 = arith.constant 0 : index
    %c0_6 = arith.constant 0 : index
    %c0_7 = arith.constant 0 : index
    %7 = vector.load %arg3[%c0_5, %c0_6, %c0_7] : memref<5x32x128xbf16, #tpu.memory_space<vmem>>, vector<1x32x128xbf16>
    %8 = vector.shape_cast %7 : vector<1x32x128xbf16> to vector<32x128xbf16>
    %cst = arith.constant dense<0.000000e+00> : vector<16x128xf32>
    %9 = tpu.matmul %6, %8, %cst {dimension_numbers = #tpu.dot_dimension_numbers<[1], [0], [0], [1], [0, 0, 1, 1], [], []>} : vector<16x32xbf16>, vector<32x128xbf16>, vector<16x128xf32> -> vector<16x128xf32>
    %10 = arith.addf %5, %9 : vector<16x128xf32>
    %c15_i32 = arith.constant 15 : i32
    %11 = tpu.dynamic_rotate %2 by %c15_i32 dim 0 : vector<16x32xf32>, i32 -> vector<16x32xf32>
    %12 = arith.truncf %11 : vector<16x32xf32> to vector<16x32xbf16>
    %c1 = arith.constant 1 : index
    %c0_8 = arith.constant 0 : index
    %c0_9 = arith.constant 0 : index
    %13 = vector.load %arg3[%c1, %c0_8, %c0_9] : memref<5x32x128xbf16, #tpu.memory_space<vmem>>, vector<1x32x128xbf16>
    %14 = vector.shape_cast %13 : vector<1x32x128xbf16> to vector<32x128xbf16>
    %cst_10 = arith.constant dense<0.000000e+00> : vector<16x128xf32>
    %15 = tpu.matmul %12, %14, %cst_10 {dimension_numbers = #tpu.dot_dimension_numbers<[1], [0], [0], [1], [0, 0, 1, 1], [], []>} : vector<16x32xbf16>, vector<32x128xbf16>, vector<16x128xf32> -> vector<16x128xf32>
    %16 = arith.addf %10, %15 : vector<16x128xf32>
    %c14_i32 = arith.constant 14 : i32
    %17 = tpu.dynamic_rotate %2 by %c14_i32 dim 0 : vector<16x32xf32>, i32 -> vector<16x32xf32>
    %18 = arith.truncf %17 : vector<16x32xf32> to vector<16x32xbf16>
    %c2 = arith.constant 2 : index
    %c0_11 = arith.constant 0 : index
    %c0_12 = arith.constant 0 : index
    %19 = vector.load %arg3[%c2, %c0_11, %c0_12] : memref<5x32x128xbf16, #tpu.memory_space<vmem>>, vector<1x32x128xbf16>
    %20 = vector.shape_cast %19 : vector<1x32x128xbf16> to vector<32x128xbf16>
    %cst_13 = arith.constant dense<0.000000e+00> : vector<16x128xf32>
    %21 = tpu.matmul %18, %20, %cst_13 {dimension_numbers = #tpu.dot_dimension_numbers<[1], [0], [0], [1], [0, 0, 1, 1], [], []>} : vector<16x32xbf16>, vector<32x128xbf16>, vector<16x128xf32> -> vector<16x128xf32>
    %22 = arith.addf %16, %21 : vector<16x128xf32>
    %c13_i32 = arith.constant 13 : i32
    %23 = tpu.dynamic_rotate %2 by %c13_i32 dim 0 : vector<16x32xf32>, i32 -> vector<16x32xf32>
    %24 = arith.truncf %23 : vector<16x32xf32> to vector<16x32xbf16>
    %c3 = arith.constant 3 : index
    %c0_14 = arith.constant 0 : index
    %c0_15 = arith.constant 0 : index
    %25 = vector.load %arg3[%c3, %c0_14, %c0_15] : memref<5x32x128xbf16, #tpu.memory_space<vmem>>, vector<1x32x128xbf16>
    %26 = vector.shape_cast %25 : vector<1x32x128xbf16> to vector<32x128xbf16>
    %cst_16 = arith.constant dense<0.000000e+00> : vector<16x128xf32>
    %27 = tpu.matmul %24, %26, %cst_16 {dimension_numbers = #tpu.dot_dimension_numbers<[1], [0], [0], [1], [0, 0, 1, 1], [], []>} : vector<16x32xbf16>, vector<32x128xbf16>, vector<16x128xf32> -> vector<16x128xf32>
    %28 = arith.addf %22, %27 : vector<16x128xf32>
    %c12_i32 = arith.constant 12 : i32
    %29 = tpu.dynamic_rotate %2 by %c12_i32 dim 0 : vector<16x32xf32>, i32 -> vector<16x32xf32>
    %30 = arith.truncf %29 : vector<16x32xf32> to vector<16x32xbf16>
    %c4 = arith.constant 4 : index
    %c0_17 = arith.constant 0 : index
    %c0_18 = arith.constant 0 : index
    %31 = vector.load %arg3[%c4, %c0_17, %c0_18] : memref<5x32x128xbf16, #tpu.memory_space<vmem>>, vector<1x32x128xbf16>
    %32 = vector.shape_cast %31 : vector<1x32x128xbf16> to vector<32x128xbf16>
    %cst_19 = arith.constant dense<0.000000e+00> : vector<16x128xf32>
    %33 = tpu.matmul %30, %32, %cst_19 {dimension_numbers = #tpu.dot_dimension_numbers<[1], [0], [0], [1], [0, 0, 1, 1], [], []>} : vector<16x32xbf16>, vector<32x128xbf16>, vector<16x128xf32> -> vector<16x128xf32>
    %34 = arith.addf %28, %33 : vector<16x128xf32>
    %35 = vector.extract_strided_slice %34 {offsets = [0, 0], sizes = [8, 128], strides = [1, 1]} : vector<16x128xf32> to vector<8x128xf32>
    %cst_20 = arith.constant 0.000000e+00 : f32
    %36 = vector.broadcast %cst_20 : f32 to vector<8x128xf32>
    %37 = arith.maximumf %35, %36 : vector<8x128xf32>
    %c0_21 = arith.constant 0 : index
    %c0_22 = arith.constant 0 : index
    %38 = vector.load %arg5[%c0_21, %c0_22] : memref<8x128xf32, #tpu.memory_space<vmem>>, vector<8x128xf32>
    tpu.vector_store %arg5[%c0_21, %c0_22], %37 {strides = array<i32>} : memref<8x128xf32, #tpu.memory_space<vmem>>, vector<8x128xf32>,
    return
  }
  func.func @transform_0(%arg0: i32) -> (i32, i32) {
    %c0_i32 = arith.constant 0 : i32
    %c0_i32_0 = arith.constant 0 : i32
    return %arg0, %c0_i32 : i32, i32
  }
  func.func @transform_1(%arg0: i32) -> (i32, i32) {
    %c1_i32 = arith.constant 1 : i32
    %0 = arith.addi %arg0, %c1_i32 : i32
    %c1_i32_0 = arith.constant 1 : i32
    %1 = arith.muli %0, %c1_i32_0 : i32
    %c0_i32 = arith.constant 0 : i32
    %c0_i32_1 = arith.constant 0 : i32
    return %1, %c0_i32 : i32, i32
  }
  func.func @transform_2(%arg0: i32) -> (i32, i32, i32) {
    %c0_i32 = arith.constant 0 : i32
    %c0_i32_0 = arith.constant 0 : i32
    %c0_i32_1 = arith.constant 0 : i32
    %c0_i32_2 = arith.constant 0 : i32
    return %c0_i32, %c0_i32_0, %c0_i32_1 : i32, i32, i32
  }
  func.func @transform_3(%arg0: i32) -> (i32, i32) {
    %c0_i32 = arith.constant 0 : i32
    %c0_i32_0 = arith.constant 0 : i32
    %c0_i32_1 = arith.constant 0 : i32
    return %c0_i32, %c0_i32_0 : i32, i32
  }
  func.func @transform_4(%arg0: i32) -> (i32, i32) {
    %c0_i32 = arith.constant 0 : i32
    %c0_i32_0 = arith.constant 0 : i32
    return %arg0, %c0_i32 : i32, i32
  }
}

</mosaic_0001>

<llo_original>
// kernel: tpu_custom_call.1
$region0: #{tpu_custom_call.1}
  #allocation0 [shape = 'u32[]', space=smem, size = 0x4, offset = 0x4, fixed_abs, tag = 'smem constant byte address 0x4 - core index']
  #allocation1 [shape = 'u32[72,128]{1,0:T(1,128)}', space=vmem, size = 0x9000, scoped, tag = 'internal scratch']
  %s0 = inlined_call_operand.hbm [shape: f32[16,32], index: 0, kind: input, shape index: {}]
  %s1 = inlined_call_operand.hbm [shape: f32[16,32], index: 1, kind: input, shape index: {}]
  %s2 = inlined_call_operand.hbm [shape: bf16[5,32,128], index: 2, kind: input, shape index: {}]
  %s3 = inlined_call_operand.vmem [shape: f32[1,128], index: 3, kind: input, shape index: {}]
  %s4 = inlined_call_operand.hbm [shape: f32[8,128], index: 4, kind: output, shape index: {}]
  %s5 = sld [smem:[#allocation0]]
  $region38: #{tpu_custom_call.1} parent=0
    _
  %s7 = ssub.s32 1, %s5
  %s8 = scalar_select 0, %s7, %s5
  $region1: #{tpu_custom_call.1} parent=0
    #allocation2 [shape = 'u8[4096]{0}', space=vmem, size = 0x1000, scoped, tag = 'input window, operand 0, single buffered']
    #allocation3 [shape = 's32[1]{0}', space=sflag, size = 0x4, scoped, tag = 'scoped memory for tpu_custom_call.1']
    #allocation4 [shape = 's32[1]{0}', space=sflag, size = 0x4, scoped, tag = 'scoped memory for tpu_custom_call.1']
    #allocation5 [shape = 'u8[4096]{0}', space=vmem, size = 0x1000, scoped, tag = 'input window, operand 1, single buffered']
    #allocation6 [shape = 's32[1]{0}', space=sflag, size = 0x4, scoped, tag = 'scoped memory for tpu_custom_call.1']
    #allocation7 [shape = 'u8[40960]{0}', space=vmem, size = 0xa000, scoped, tag = 'input window, operand 2, single buffered']
    #allocation8 [shape = 'u8[4096]{0}', space=vmem, size = 0x1000, scoped, tag = 'output window, operand 0, single buffered']
    %9 = vsyncpa [#allocation3], 0
    %10 = vsyncpa [#allocation6], 0
    %11 = vsyncpa [#allocation4], 0
    // Predicated region
    $region2: #{tpu_custom_call.1} parent=1 // pred_check
      _
    $region3: #{tpu_custom_call.1} parent=1 // pred_check_branch
      %13 = sbr.rel (0) target = $region5
    $region4: #{tpu_custom_call.1} parent=1 // pred_region
      %15 = vsyncadd [#allocation3], 0
      %s17 = sshll.u32 %s0, 4
      %s18 = int_to_ptr.hbm [resolvable:$true] %s17
      %s19 = sshll.u32 [#allocation2], 4
      %s20 = int_to_ptr.vmem [resolvable:$true] %s19
      %22 = dma.hbm_to_vmem [thread:$0]  %s18, 128, %s20, [#allocation3]
    $region5: #{tpu_custom_call.1} parent=1 // pred_fallthru
      _
    // Predicated region
    $region6: #{tpu_custom_call.1} parent=1 // pred_check
      _
    $region7: #{tpu_custom_call.1} parent=1 // pred_check_branch
      %24 = sbr.rel (0) target = $region9
    $region8: #{tpu_custom_call.1} parent=1 // pred_region
      %s25 = sadd.s32 0, 1
      %27 = vsyncadd [#allocation6], 0
      %s28 = smul.addr %s25, 8
      %s29 = scalar_lea.hbm %s1, %s28
      %s31 = sshll.u32 %s29, 4
      %s32 = int_to_ptr.hbm [resolvable:$true] %s31
      %s33 = sshll.u32 [#allocation5], 4
      %s34 = int_to_ptr.vmem [resolvable:$true] %s33
      %36 = dma.hbm_to_vmem [thread:$0]  %s32, 128, %s34, [#allocation6]
    $region9: #{tpu_custom_call.1} parent=1 // pred_fallthru
      _
    // Predicated region
    $region10: #{tpu_custom_call.1} parent=1 // pred_check
      _
    $region11: #{tpu_custom_call.1} parent=1 // pred_check_branch
      %38 = sbr.rel (0) target = $region13
    $region12: #{tpu_custom_call.1} parent=1 // pred_region
      %40 = vsyncadd [#allocation6], 0
      %s41 = sshll.u32 %s2, 4
      %s42 = int_to_ptr.hbm [resolvable:$true] %s41
      %s43 = sshll.u32 [#allocation7], 4
      %s44 = int_to_ptr.vmem [resolvable:$true] %s43
      %49 = dma.hbm_to_vmem [thread:$0]  %s42, 1280, %s44, [#allocation6], 64, 64, 4
    $region13: #{tpu_custom_call.1} parent=1 // pred_fallthru
      _
    // Predicated region
    $region14: #{tpu_custom_call.1} parent=1 // pred_check
      _
    $region15: #{tpu_custom_call.1} parent=1 // pred_check_branch
      %51 = sbr.rel (0) target = $region17
    $region16: #{tpu_custom_call.1} parent=1 // pred_region
      _
    $region17: #{tpu_custom_call.1} parent=1 // pred_fallthru
      _
    // Predicated region
    $region18: #{tpu_custom_call.1} parent=1 // pred_check
      _
    $region19: #{tpu_custom_call.1} parent=1 // pred_check_branch
      %53 = sbr.rel (0) target = $region21
    $region20: #{tpu_custom_call.1} parent=1 // pred_region
      %55 = dma.done [#allocation3], 128
    $region21: #{tpu_custom_call.1} parent=1 // pred_fallthru
      _
    // Predicated region
    $region22: #{tpu_custom_call.1} parent=1 // pred_check
      _
    $region23: #{tpu_custom_call.1} parent=1 // pred_check_branch
      %57 = sbr.rel (0) target = $region25
    $region24: #{tpu_custom_call.1} parent=1 // pred_region
      %59 = dma.done [#allocation6], 128
    $region25: #{tpu_custom_call.1} parent=1 // pred_fallthru
      _
    // Predicated region
    $region26: #{tpu_custom_call.1} parent=1 // pred_check
      _
    $region27: #{tpu_custom_call.1} parent=1 // pred_check_branch
      %61 = sbr.rel (0) target = $region29
    $region28: #{tpu_custom_call.1} parent=1 // pred_region
      %63 = dma.done [#allocation6], 1280
    $region29: #{tpu_custom_call.1} parent=1 // pred_fallthru
      _
    %s64 = sadd.s32 0, 1
    %v66 = vld [vmem:[#allocation2] sm:$0xff]
    %v67 = vld [vmem:[#allocation5] sm:$0xff]
    %v68 = vld [vmem:[%s3] sm:$0x1]
    %v70 = vperm.slane %v68, 0
    %v72 = vpack.c.bf16 %v67, %v66
    %v73 = vld [vmem:[#allocation7] sm:$0xf]
    %v74 = vld [vmem:[#allocation7 + $0x4] sm:$0xf]
    %v75 = vld [vmem:[#allocation7 + $0x8] sm:$0xf]
    %v76 = vld [vmem:[#allocation7 + $0xc] sm:$0xf]
    %v81 = vunpack.c.l.b16 %v73
    %v82 = vunpack.c.l.b16 %v74
    %v83 = vunpack.c.l.b16 %v75
    %v84 = vunpack.c.l.b16 %v76
    %v85 = vpack.c.b16 %v82, %v81
    %v86 = vpack.c.b16 %v84, %v83
    %vm89 = vcmask 261120
    %v91 = vsel %vm89, %v72, 0
    %93 = vmatpush.bf16.msra.mxu0 0
    %94 = vmatpush.bf16.msra.mxu0 0
    %95 = vmatpush.bf16.msra.mxu0 0
    %96 = vmatpush.bf16.msra.mxu0 0
    %97 = vmatpush.bf16.msra.mxu0 0
    %98 = vmatpush.bf16.msra.mxu0 0
    %99 = vmatpush.bf16.msra.mxu0 %v86
    %100 = vmatpush.bf16.msra.mxu0 %v85
    %101 = vmatmul.bf16.gmra.mxu0 %v91
    %v102 = vpop.f32.mrf.mxu0
    %v103 = vadd.f32 0.0, %v102
    %v104 = vpop.f32.mrf.mxu0
    %105 = vdwg.mxu0
    %v106 = vadd.f32 %v70, %v103
    %v107 = vrot.slane %v66, 1
    %v108 = vrot.slane %v67, 1
    %v109 = vlaneseq
    %v110 = vshrl.u32 %v109, 7
    %vm111 = vcmp.lt.s32.totalorder %v110, 7
    %v112 = vsel %vm111, %v107, %v108
    %v113 = vsel %vm111, %v108, %v107
    %v114 = vpack.c.bf16 %v113, %v112
    %s115 = scalar_lea.vmem [#allocation7], 16
    %v116 = vld [vmem:[%s115] sm:$0xf]
    %v117 = vld [vmem:[%s115 + $0x4] sm:$0xf]
    %v118 = vld [vmem:[%s115 + $0x8] sm:$0xf]
    %v119 = vld [vmem:[%s115 + $0xc] sm:$0xf]
    %v124 = vunpack.c.l.b16 %v116
    %v125 = vunpack.c.l.b16 %v117
    %v126 = vunpack.c.l.b16 %v118
    %v127 = vunpack.c.l.b16 %v119
    %v128 = vpack.c.b16 %v125, %v124
    %v129 = vpack.c.b16 %v127, %v126
    %v133 = vsel %vm89, %v114, 0
    %135 = vmatpush.bf16.msra.mxu0 0
    %136 = vmatpush.bf16.msra.mxu0 0
    %137 = vmatpush.bf16.msra.mxu0 0
    %138 = vmatpush.bf16.msra.mxu0 0
    %139 = vmatpush.bf16.msra.mxu0 0
    %140 = vmatpush.bf16.msra.mxu0 0
    %141 = vmatpush.bf16.msra.mxu0 %v129
    %142 = vmatpush.bf16.msra.mxu0 %v128
    %143 = vmatmul.bf16.gmra.mxu0 %v133
    %v144 = vpop.f32.mrf.mxu0
    %v145 = vadd.f32 0.0, %v144
    %v146 = vpop.f32.mrf.mxu0
    %147 = vdwg.mxu0
    %v148 = vadd.f32 %v106, %v145
    %v149 = vrot.slane %v66, 2
    %v150 = vrot.slane %v67, 2
    %vm151 = vcmp.lt.s32.totalorder %v110, 6
    %v152 = vsel %vm151, %v149, %v150
    %v153 = vsel %vm151, %v150, %v149
    %v154 = vpack.c.bf16 %v153, %v152
    %s155 = scalar_lea.vmem [#allocation7], 32
    %v156 = vld [vmem:[%s155] sm:$0xf]
    %v157 = vld [vmem:[%s155 + $0x4] sm:$0xf]
    %v158 = vld [vmem:[%s155 + $0x8] sm:$0xf]
    %v159 = vld [vmem:[%s155 + $0xc] sm:$0xf]
    %v164 = vunpack.c.l.b16 %v156
    %v165 = vunpack.c.l.b16 %v157
    %v166 = vunpack.c.l.b16 %v158
    %v167 = vunpack.c.l.b16 %v159
    %v168 = vpack.c.b16 %v165, %v164
    %v169 = vpack.c.b16 %v167, %v166
    %v173 = vsel %vm89, %v154, 0
    %175 = vmatpush.bf16.msra.mxu0 0
    %176 = vmatpush.bf16.msra.mxu0 0
    %177 = vmatpush.bf16.msra.mxu0 0
    %178 = vmatpush.bf16.msra.mxu0 0
    %179 = vmatpush.bf16.msra.mxu0 0
    %180 = vmatpush.bf16.msra.mxu0 0
    %181 = vmatpush.bf16.msra.mxu0 %v169
    %182 = vmatpush.bf16.msra.mxu0 %v168
    %183 = vmatmul.bf16.gmra.mxu0 %v173
    %v184 = vpop.f32.mrf.mxu0
    %v185 = vadd.f32 0.0, %v184
    %v186 = vpop.f32.mrf.mxu0
    %187 = vdwg.mxu0
    %v188 = vadd.f32 %v148, %v185
    %v189 = vrot.slane %v66, 3
    %v190 = vrot.slane %v67, 3
    %vm191 = vcmp.lt.s32.totalorder %v110, 5
    %v192 = vsel %vm191, %v189, %v190
    %v193 = vsel %vm191, %v190, %v189
    %v194 = vpack.c.bf16 %v193, %v192
    %s195 = scalar_lea.vmem [#allocation7], 48
    %v196 = vld [vmem:[%s195] sm:$0xf]
    %v197 = vld [vmem:[%s195 + $0x4] sm:$0xf]
    %v198 = vld [vmem:[%s195 + $0x8] sm:$0xf]
    %v199 = vld [vmem:[%s195 + $0xc] sm:$0xf]
    %v204 = vunpack.c.l.b16 %v196
    %v205 = vunpack.c.l.b16 %v197
    %v206 = vunpack.c.l.b16 %v198
    %v207 = vunpack.c.l.b16 %v199
    %v208 = vpack.c.b16 %v205, %v204
    %v209 = vpack.c.b16 %v207, %v206
    %v213 = vsel %vm89, %v194, 0
    %215 = vmatpush.bf16.msra.mxu0 0
    %216 = vmatpush.bf16.msra.mxu0 0
    %217 = vmatpush.bf16.msra.mxu0 0
    %218 = vmatpush.bf16.msra.mxu0 0
    %219 = vmatpush.bf16.msra.mxu0 0
    %220 = vmatpush.bf16.msra.mxu0 0
    %221 = vmatpush.bf16.msra.mxu0 %v209
    %222 = vmatpush.bf16.msra.mxu0 %v208
    %223 = vmatmul.bf16.gmra.mxu0 %v213
    %v224 = vpop.f32.mrf.mxu0
    %v225 = vadd.f32 0.0, %v224
    %v226 = vpop.f32.mrf.mxu0
    %227 = vdwg.mxu0
    %v228 = vadd.f32 %v188, %v225
    %v229 = vrot.slane %v66, 4
    %v230 = vrot.slane %v67, 4
    %vm231 = vcmp.lt.s32.totalorder %v110, 4
    %v232 = vsel %vm231, %v229, %v230
    %v233 = vsel %vm231, %v230, %v229
    %v234 = vpack.c.bf16 %v233, %v232
    %s235 = scalar_lea.vmem [#allocation7], 64
    %v236 = vld [vmem:[%s235] sm:$0xf]
    %v237 = vld [vmem:[%s235 + $0x4] sm:$0xf]
    %v238 = vld [vmem:[%s235 + $0x8] sm:$0xf]
    %v239 = vld [vmem:[%s235 + $0xc] sm:$0xf]
    %v244 = vunpack.c.l.b16 %v236
    %v245 = vunpack.c.l.b16 %v237
    %v246 = vunpack.c.l.b16 %v238
    %v247 = vunpack.c.l.b16 %v239
    %v248 = vpack.c.b16 %v245, %v244
    %v249 = vpack.c.b16 %v247, %v246
    %v253 = vsel %vm89, %v234, 0
    %255 = vmatpush.bf16.msra.mxu0 0
    %256 = vmatpush.bf16.msra.mxu0 0
    %257 = vmatpush.bf16.msra.mxu0 0
    %258 = vmatpush.bf16.msra.mxu0 0
    %259 = vmatpush.bf16.msra.mxu0 0
    %260 = vmatpush.bf16.msra.mxu0 0
    %261 = vmatpush.bf16.msra.mxu0 %v249
    %262 = vmatpush.bf16.msra.mxu0 %v248
    %263 = vmatmul.bf16.gmra.mxu0 %v253
    %v264 = vpop.f32.mrf.mxu0
    %v265 = vadd.f32 0.0, %v264
    %v266 = vpop.f32.mrf.mxu0
    %267 = vdwg.mxu0
    %v268 = vadd.f32 %v228, %v265
    %v269 = vmax.f32 %v268, 0.0
    %270 = vst [vmem:[#allocation8] sm:$0xff] %v269
    // Predicated region
    $region30: #{tpu_custom_call.1} parent=1 // pred_check
      _
    $region31: #{tpu_custom_call.1} parent=1 // pred_check_branch
      %272 = sbr.rel (0) target = $region33
    $region32: #{tpu_custom_call.1} parent=1 // pred_region
      %274 = vsyncadd [#allocation4], 0
      %s276 = sshll.u32 [#allocation8], 4
      %s277 = int_to_ptr.vmem [resolvable:$true] %s276
      %s278 = sshll.u32 %s4, 4
      %s279 = int_to_ptr.hbm [resolvable:$true] %s278
      %281 = dma.vmem_to_hbm [thread:$0]  %s277, 128, %s279, [#allocation4]
    $region33: #{tpu_custom_call.1} parent=1 // pred_fallthru
      _
    // Predicated region
    $region34: #{tpu_custom_call.1} parent=1 // pred_check
      _
    $region35: #{tpu_custom_call.1} parent=1 // pred_check_branch
      %283 = sbr.rel (0) target = $region37
    $region36: #{tpu_custom_call.1} parent=1 // pred_region
      %285 = dma.done [#allocation4], 128
    $region37: #{tpu_custom_call.1} parent=1 // pred_fallthru
      _
    %286 = vsyncpa [#allocation3], 1
    %287 = vsyncpa [#allocation6], 1
    %288 = vsyncpa [#allocation4], 1

</llo_original>
